<compile_context>
chip_gen: v7x
topology: tpu7x:2x2x1
jax: 0.10.0
libtpu: 0.0.40
codegen_flags: <defaults>
</compile_context>

<pallas_src>
import numpy as np
import jax
import jax.numpy as jnp
from jax.experimental import pallas as pl
from jax.experimental.pallas import tpu as pltpu


# ------------------- host-side constant matrices (pool / upsample) ------------------

def adaptive_pool_matrix(in_size: int, out_size: int) -> np.ndarray:
    """Row-stochastic (out_size, in_size) matrix reproducing AdaptiveAvgPool1d bins."""
    m = np.zeros((out_size, in_size), dtype=np.float32)
    for i in range(out_size):
        start = (i * in_size) // out_size
        end = -((-(i + 1) * in_size) // out_size)  # ceil((i+1)*in/out)
        m[i, start:end] = 1.0 / float(end - start)
    return m


def bilinear_matrix(out_size: int, in_size: int) -> np.ndarray:
    """(out_size, in_size) interpolation matrix, mode='bilinear', align_corners=True."""
    m = np.zeros((out_size, in_size), dtype=np.float32)
    if in_size == 1:
        m[:, 0] = 1.0
        return m
    for j in range(out_size):
        src = j * (in_size - 1) / (out_size - 1) if out_size > 1 else 0.0
        i0 = int(np.floor(src))
        i1 = min(i0 + 1, in_size - 1)
        frac = src - i0
        m[j, i0] += 1.0 - frac
        m[j, i1] += frac
    return m


# ------------------------------------ kernel ----------------------------------------

def psp_kernel(x_ref, pool_ref, w_ref, shift_ref, up_ref, o_ref, y_scratch):
    t = pl.program_id(1)

    # Pooling + 1x1 conv (BN-scale folded) + shift + ReLU: once per image (t == 0).
    @pl.when(t == 0)
    def _():
        pool = pool_ref[...]                              # (HW, P2)  compute dtype
        x = x_ref[0].astype(pool.dtype)                   # (C, HW)   cast on the VPU
        pooled_t = jnp.dot(x, pool,
                           preferred_element_type=jnp.float32)        # (C, P2) f32
        w = w_ref[...]                                    # (OC, C)   compute dtype
        y_t = jnp.dot(w, pooled_t.astype(w.dtype),
                      preferred_element_type=jnp.float32)              # (OC, P2) f32
        y_t = y_t + shift_ref[...]                        # (OC, 1) lane-broadcast, f32
        y_scratch[...] = jnp.maximum(y_t, 0.0)            # stored once, f32

    # Bilinear upsample, streamed per output-spatial tile (S on the lane axis).
    out_t = jnp.dot(y_scratch[...], up_ref[...],
                    preferred_element_type=jnp.float32)                # (OC, S) f32
    o_ref[0] = out_t.astype(o_ref.dtype)


# ----------------------------------- wrapper ----------------------------------------

def psp_block(x, conv_w, bn_scale, bn_shift, pool_size, *,
              spatial_tile=None, compute_dtype=jnp.bfloat16, out_dtype=None):
    """x: (N, C, H, W); conv_w: (OC, C); bn_scale/bn_shift: (OC,). Returns (N, OC, H, W).

    out_dtype defaults to compute_dtype (bf16) per the perf review (halves the
    dominant output HBM stream); pass jnp.float32 for a full-precision store.
    """
    N, C, H, W = x.shape
    OC = conv_w.shape[0]
    P = int(pool_size)
    P2 = P * P
    HW = H * W
    if out_dtype is None:
        out_dtype = compute_dtype

    # Host constants: separable pool/upsample matrices fused via kron (tiny),
    # pre-transposed for the NCHW orientation.
    ph = adaptive_pool_matrix(H, P)                       # (P, H)
    pw = adaptive_pool_matrix(W, P)                       # (P, W)
    uh = bilinear_matrix(H, P)                            # (H, P)
    uw = bilinear_matrix(W, P)                            # (W, P)
    pool_t = jnp.asarray(np.kron(ph, pw).T, dtype=compute_dtype)    # (HW, P2)
    up_t = jnp.asarray(np.kron(uh, uw).T, dtype=jnp.float32)        # (P2, HW), f32

    # Fold BN scale into the 1x1 conv weight; keep only the (OC, 1) shift in f32.
    w_folded = (conv_w.astype(jnp.float32)
                * bn_scale.astype(jnp.float32)[:, None]).astype(compute_dtype)  # (OC, C)
    shift_2d = bn_shift.reshape(OC, 1).astype(jnp.float32)                      # (OC, 1)

    # NCHW stays NCHW: flattening spatial is a pure reshape (no transpose, no copy).
    x_flat = x.reshape(N, C, HW)

    # Output-spatial tile (lane axis): largest multiple-of-128 divisor of HW giving a
    # ~2 MiB output tile; fall back to the full HW (full-dim block is always legal).
    out_itemsize = jnp.dtype(out_dtype).itemsize
    if spatial_tile is None:
        target_bytes = 2 * 1024 * 1024
        cands = [d for d in range(128, HW + 1, 128) if HW % d == 0]
        if cands:
            fitting = [d for d in cands if d * OC * out_itemsize <= target_bytes]
            spatial_tile = max(fitting) if fitting else min(cands)
        else:
            spatial_tile = HW
    S = int(spatial_tile)
    assert HW % S == 0 and (S == HW or S % 128 == 0), "spatial tile must be a "\
        "multiple of 128 dividing H*W, or H*W itself"
    T = HW // S

    # VMEM budget (double-buffered pipelined blocks + scratch + in-kernel x cast),
    # clamped to the physical VMEM of the current chip generation.
    def _bytes(shape, dt):
        return int(np.prod(shape)) * jnp.dtype(dt).itemsize

    needed = (2 * _bytes((1, C, HW), x.dtype)             # x block (native dtype)
              + _bytes((C, HW), compute_dtype)            # in-kernel cast of x
              + 2 * _bytes((HW, P2), compute_dtype)       # PoolMat^T
              + 2 * _bytes((OC, C), compute_dtype)        # folded conv weight
              + 2 * _bytes((OC, 1), jnp.float32)          # bn shift
              + 2 * _bytes((P2, S), jnp.float32)          # UpMat^T tile
              + 2 * _bytes((1, OC, S), out_dtype)         # output tile
              + _bytes((OC, P2), jnp.float32))            # y scratch
    try:
        vmem_cap = int(getattr(pltpu.get_tpu_info(), "vmem_capacity_bytes",
                               64 * 1024 * 1024))
    except Exception:
        vmem_cap = 64 * 1024 * 1024                       # conservative (v7x per-TC)
    vmem_limit = int(min(max(int(1.25 * needed), 32 * 1024 * 1024),
                         int(0.9 * vmem_cap)))

    out_flat = pl.pallas_call(
        psp_kernel,
        out_shape=jax.ShapeDtypeStruct((N, OC, HW), out_dtype),
        grid_spec=pltpu.PrefetchScalarGridSpec(
            num_scalar_prefetch=0,
            grid=(N, T),
            in_specs=[
                pl.BlockSpec((1, C, HW), lambda n, t: (n, 0, 0)),   # x (resident per n)
                pl.BlockSpec((HW, P2), lambda n, t: (0, 0)),        # PoolMat^T
                pl.BlockSpec((OC, C), lambda n, t: (0, 0)),         # folded conv weight
                pl.BlockSpec((OC, 1), lambda n, t: (0, 0)),         # bn shift
                pl.BlockSpec((P2, S), lambda n, t: (0, t)),         # UpMat^T tile
            ],
            out_specs=pl.BlockSpec((1, OC, S), lambda n, t: (n, 0, t)),
            scratch_shapes=[pltpu.VMEM((OC, P2), jnp.float32)],
        ),
        compiler_params=pltpu.CompilerParams(
            dimension_semantics=("parallel", "arbitrary"),
            vmem_limit_bytes=vmem_limit,
        ),
    )(x_flat, pool_t, w_folded, shift_2d, up_t)

    # Pure reshape back to (N, OC, H, W) — no transpose.
    return out_flat.reshape(N, OC, H, W)


# --------------------------- pure-JAX f32 reference (check) -------------------------

def psp_block_ref(x, conv_w, bn_scale, bn_shift, pool_size):
    N, C, H, W = x.shape
    P = pool_size
    ph = jnp.asarray(adaptive_pool_matrix(H, P))
    pw = jnp.asarray(adaptive_pool_matrix(W, P))
    uh = jnp.asarray(bilinear_matrix(H, P))
    uw = jnp.asarray(bilinear_matrix(W, P))
    pooled = jnp.einsum('ph,nchw,qw->ncpq', ph, x, pw)
    y = jnp.einsum('oc,ncpq->nopq', conv_w, pooled)
    y = y * bn_scale[None, :, None, None] + bn_shift[None, :, None, None]
    y = jnp.maximum(y, 0.0)
    return jnp.einsum('hp,nopq,wq->nohw', uh, y, uw)


# ------------------------------------- main ------------------------------------------

if __name__ == "__main__":
    N, C, OC, H, W = 2, 4, 8, 16, 16
    pool_size = 4  # > 1 -> BatchNorm branch (conv has no bias)

    key = jax.random.PRNGKey(0)
    kx, kw = jax.random.split(key)
    x = jax.random.normal(kx, (N, C, H, W), dtype=jnp.float32)

    # Conv2d(C, OC, 1x1, bias=False) weight (OC, C, 1, 1) -> (OC, C)
    conv_w = (jax.random.normal(kw, (OC, C), dtype=jnp.float32)
              * (1.0 / np.sqrt(C)))

    # BatchNorm2d (eval-mode) folded: scale = gamma/sqrt(var+eps), shift = beta - mean*scale
    eps = 1e-5
    gamma = 1.0 + 0.1 * jnp.arange(OC, dtype=jnp.float32)
    beta = 0.05 * jnp.arange(OC, dtype=jnp.float32)
    run_mean = 0.01 * jnp.arange(OC, dtype=jnp.float32)
    run_var = 1.0 + 0.02 * jnp.arange(OC, dtype=jnp.float32)
    bn_scale = gamma / jnp.sqrt(run_var + eps)
    bn_shift = beta - run_mean * bn_scale

    # spatial_tile=128 exercises the streamed-upsample path (T = HW/S = 2).
    out = psp_block(x, conv_w, bn_scale, bn_shift, pool_size, spatial_tile=128)
    out = jax.block_until_ready(out)

    ref = psp_block_ref(x, conv_w, bn_scale, bn_shift, pool_size)
    # bf16 matmul inputs + bf16 output store vs the f32 reference -> loosened tolerance.
    np.testing.assert_allclose(np.asarray(out.astype(jnp.float32)), np.asarray(ref),
                               rtol=3e-2, atol=3e-2)

    print("KERNEL_OK")
</pallas_src>

<mosaic_0001>
module attributes {stable_mosaic.version = 11 : i64} {
  func.func @psp_kernel(%arg0: i32, %arg1: i32, %arg2: memref<1x4x256xf32, #tpu.memory_space<vmem>>, %arg3: memref<256x16xbf16, #tpu.memory_space<vmem>>, %arg4: memref<8x4xbf16, #tpu.memory_space<vmem>>, %arg5: memref<8x1xf32, #tpu.memory_space<vmem>>, %arg6: memref<16x128xf32, #tpu.memory_space<vmem>>, %arg7: memref<1x8x128xbf16, #tpu.memory_space<vmem>>, %arg8: memref<8x16xf32, #tpu.memory_space<vmem>>) attributes {dimension_semantics = [#tpu.dimension_semantics<parallel>, #tpu.dimension_semantics<arbitrary>], iteration_bounds = array<i64: 2, 2>, scalar_prefetch = 0 : i64, scratch_operands = 1 : i64, tpu.core_type = #tpu.core_type<tc>, window_params = [{transform_indices = @transform_0, window_bounds = array<i64: 1, 4, 256>}, {pipeline_mode = #tpu.pipeline_mode<synchronous>, transform_indices = @transform_1, window_bounds = array<i64: 256, 16>}, {pipeline_mode = #tpu.pipeline_mode<synchronous>, transform_indices = @transform_2, window_bounds = array<i64: 8, 4>}, {pipeline_mode = #tpu.pipeline_mode<synchronous>, transform_indices = @transform_3, window_bounds = array<i64: 8, 1>}, {transform_indices = @transform_4, window_bounds = array<i64: 16, 128>}, {transform_indices = @transform_5, window_bounds = array<i64: 1, 8, 128>}]} {
    %c0_i32 = arith.constant 0 : i32
    %0 = arith.cmpi eq, %arg1, %c0_i32 : i32
    %1 = arith.extui %0 : i1 to i32
    %c0_i32_0 = arith.constant 0 : i32
    %2 = arith.cmpi ne, %1, %c0_i32_0 : i32
    scf.if %2 {
      %c0_7 = arith.constant 0 : index
      %c0_8 = arith.constant 0 : index
      %10 = vector.load %arg3[%c0_7, %c0_8] : memref<256x16xbf16, #tpu.memory_space<vmem>>, vector<256x16xbf16>
      %c0_9 = arith.constant 0 : index
      %c0_10 = arith.constant 0 : index
      %c0_11 = arith.constant 0 : index
      %11 = vector.load %arg2[%c0_9, %c0_10, %c0_11] : memref<1x4x256xf32, #tpu.memory_space<vmem>>, vector<1x4x256xf32>
      %12 = vector.shape_cast %11 : vector<1x4x256xf32> to vector<4x256xf32>
      %13 = arith.truncf %12 : vector<4x256xf32> to vector<4x256xbf16>
      %cst_12 = arith.constant dense<0.000000e+00> : vector<4x16xf32>
      %14 = tpu.matmul %13, %10, %cst_12 {dimension_numbers = #tpu.dot_dimension_numbers<[1], [0], [0], [1], [0, 0, 1, 1], [], []>} : vector<4x256xbf16>, vector<256x16xbf16>, vector<4x16xf32> -> vector<4x16xf32>
      %c0_13 = arith.constant 0 : index
      %c0_14 = arith.constant 0 : index
      %15 = vector.load %arg4[%c0_13, %c0_14] : memref<8x4xbf16, #tpu.memory_space<vmem>>, vector<8x4xbf16>
      %16 = arith.truncf %14 : vector<4x16xf32> to vector<4x16xbf16>
      %cst_15 = arith.constant dense<0.000000e+00> : vector<8x16xf32>
      %17 = tpu.matmul %15, %16, %cst_15 {dimension_numbers = #tpu.dot_dimension_numbers<[1], [0], [0], [1], [0, 0, 1, 1], [], []>} : vector<8x4xbf16>, vector<4x16xbf16>, vector<8x16xf32> -> vector<8x16xf32>
      %c0_16 = arith.constant 0 : index
      %c0_17 = arith.constant 0 : index
      %18 = vector.load %arg5[%c0_16, %c0_17] : memref<8x1xf32, #tpu.memory_space<vmem>>, vector<8x1xf32>
      %19 = vector.broadcast %18 : vector<8x1xf32> to vector<8x16xf32>
      %20 = arith.addf %17, %19 : vector<8x16xf32>
      %cst_18 = arith.constant 0.000000e+00 : f32
      %21 = vector.broadcast %cst_18 : f32 to vector<8x16xf32>
      %22 = arith.maximumf %20, %21 : vector<8x16xf32>
      %c0_19 = arith.constant 0 : index
      %c0_20 = arith.constant 0 : index
      %23 = vector.load %arg8[%c0_19, %c0_20] : memref<8x16xf32, #tpu.memory_space<vmem>>, vector<8x16xf32>
      tpu.vector_store %arg8[%c0_19, %c0_20], %22 {strides = array<i32>} : memref<8x16xf32, #tpu.memory_space<vmem>>, vector<8x16xf32>,
    } else {
    }
    %c0 = arith.constant 0 : index
    %c0_1 = arith.constant 0 : index
    %3 = vector.load %arg8[%c0, %c0_1] : memref<8x16xf32, #tpu.memory_space<vmem>>, vector<8x16xf32>
    %c0_2 = arith.constant 0 : index
    %c0_3 = arith.constant 0 : index
    %4 = vector.load %arg6[%c0_2, %c0_3] : memref<16x128xf32, #tpu.memory_space<vmem>>, vector<16x128xf32>
    %cst = arith.constant dense<0.000000e+00> : vector<8x128xf32>
    %5 = tpu.matmul %3, %4, %cst {dimension_numbers = #tpu.dot_dimension_numbers<[1], [0], [0], [1], [0, 0, 1, 1], [], []>} : vector<8x16xf32>, vector<16x128xf32>, vector<8x128xf32> -> vector<8x128xf32>
    %6 = arith.truncf %5 : vector<8x128xf32> to vector<8x128xbf16>
    %c0_4 = arith.constant 0 : index
    %c0_5 = arith.constant 0 : index
    %c0_6 = arith.constant 0 : index
    %7 = vector.load %arg7[%c0_4, %c0_5, %c0_6] : memref<1x8x128xbf16, #tpu.memory_space<vmem>>, vector<1x8x128xbf16>
    %8 = vector.shape_cast %7 : vector<1x8x128xbf16> to vector<8x128xbf16>
    %9 = vector.shape_cast %6 : vector<8x128xbf16> to vector<1x8x128xbf16>
    tpu.vector_store %arg7[%c0_4, %c0_5, %c0_6], %9 {strides = array<i32>} : memref<1x8x128xbf16, #tpu.memory_space<vmem>>, vector<1x8x128xbf16>,
    return
  }
  func.func @transform_0(%arg0: i32, %arg1: i32) -> (i32, i32, i32) {
    %c0_i32 = arith.constant 0 : i32
    %c0_i32_0 = arith.constant 0 : i32
    %c0_i32_1 = arith.constant 0 : i32
    return %arg0, %c0_i32, %c0_i32_0 : i32, i32, i32
  }
  func.func @transform_1(%arg0: i32, %arg1: i32) -> (i32, i32) {
    %c0_i32 = arith.constant 0 : i32
    %c0_i32_0 = arith.constant 0 : i32
    %c0_i32_1 = arith.constant 0 : i32
    return %c0_i32, %c0_i32_0 : i32, i32
  }
  func.func @transform_2(%arg0: i32, %arg1: i32) -> (i32, i32) {
    %c0_i32 = arith.constant 0 : i32
    %c0_i32_0 = arith.constant 0 : i32
    %c0_i32_1 = arith.constant 0 : i32
    return %c0_i32, %c0_i32_0 : i32, i32
  }
  func.func @transform_3(%arg0: i32, %arg1: i32) -> (i32, i32) {
    %c0_i32 = arith.constant 0 : i32
    %c0_i32_0 = arith.constant 0 : i32
    %c0_i32_1 = arith.constant 0 : i32
    return %c0_i32, %c0_i32_0 : i32, i32
  }
  func.func @transform_4(%arg0: i32, %arg1: i32) -> (i32, i32) {
    %c0_i32 = arith.constant 0 : i32
    %c0_i32_0 = arith.constant 0 : i32
    return %c0_i32, %arg1 : i32, i32
  }
  func.func @transform_5(%arg0: i32, %arg1: i32) -> (i32, i32, i32) {
    %c0_i32 = arith.constant 0 : i32
    %c0_i32_0 = arith.constant 0 : i32
    return %arg0, %c0_i32, %arg1 : i32, i32, i32
  }
}

</mosaic_0001>

<llo_original>
// kernel: tpu_custom_call.1
$region0: #{tpu_custom_call.1}
  #allocation0 [shape = 'u32[]', space=smem, size = 0x4, offset = 0x4, fixed_abs, tag = 'smem constant byte address 0x4 - core index']
  #allocation1 [shape = 'u32[144,128]{1,0:T(1,128)}', space=vmem, size = 0x12000, scoped, tag = 'internal scratch']
  #allocation2 [shape = 'f32[8,16]{1,0:T(8,128)}', space=vmem, size = 0x1000, scoped, tag = 'scratch operand']
  %s0 = inlined_call_operand.vmem [shape: f32[2,4,256], index: 0, kind: input, shape index: {}]
  %s1 = inlined_call_operand.vmem [shape: bf16[256,16], index: 1, kind: input, shape index: {}]
  %s2 = inlined_call_operand.vmem [shape: bf16[8,4], index: 2, kind: input, shape index: {}]
  %s3 = inlined_call_operand.vmem [shape: f32[8,1], index: 3, kind: input, shape index: {}]
  %s4 = inlined_call_operand.vmem [shape: f32[16,256], index: 4, kind: input, shape index: {}]
  %s5 = inlined_call_operand.hbm [shape: bf16[2,8,256], index: 5, kind: output, shape index: {}]
  %s6 = sld [smem:[#allocation0]]
  $region95: #{tpu_custom_call.1} parent=0
    _
  %s8 = ssub.s32 1, %s6
  %s9 = scalar_select 0, %s8, %s6
  $region1: #{tpu_custom_call.1} parent=0
    #allocation3 [shape = 'u8[16384]{0}', space=vmem, size = 0x4000, scoped, tag = 'input window, operand 4']
    #allocation4 [shape = 'u8[4096]{0}', space=vmem, size = 0x1000, scoped, tag = 'output window, operand 0']
    #allocation5 [shape = 's32[2]{0}', space=sflag, size = 0x8, scoped, tag = 'scoped memory for tpu_custom_call.1']
    %10 = vsyncpa [#allocation5], 0
    %s11 = scalar_lea.sflag [#allocation5], 1
    %12 = vsyncpa %s11, 0
    loop: start=0, step=1, limit=6
    $region2: #{tpu_custom_call.1} parent=1 // loop_pre_header
      _
    $region3: #{tpu_custom_call.1} parent=1 // loop_header
      %s14 = sphi 0, %s18
      %p15 = scmp.ge.s32.totalorder %s14, 6
      %s21 = sphi 0, %s33
      %s22 = sphi 0, %s29
      %s23 = sphi 0, %s21
      %s24 = sphi 0, %s22
      %s25 = sphi 0, %s23
      %s26 = sphi 0, %s24
      %s36 = sphi 0, %s38
      %s39 = sphi 0, %s36
      %s40 = sphi 0, %s39
      %s56 = sphi 0, %s40
      %s60 = sphi 0, %s60
      %s62 = sphi 0, %s60
      %s63 = sphi 0, %s62
      %s77 = sphi 0, %s63
      %s81 = sphi 0, %s81
      %s83 = sphi 0, %s81
      %s84 = sphi 0, %s83
      %s98 = sphi 0, %s84
      %s102 = sphi 0, %s102
      %s104 = sphi 0, %s102
      %s105 = sphi 0, %s104
      %s119 = sphi 0, %s105
      %s125 = sphi 0, %s127
      %s128 = sphi 0, %s125
      %s129 = sphi 0, %s128
      %s145 = sphi 0, %s129
      %s153 = sphi 0, %s155
      %s156 = sphi 0, %s153
      %s157 = sphi 0, %s156
      %s173 = sphi 0, %s157
    $region4: #{tpu_custom_call.1} parent=1 // loop_header_branch
      %17 = sbr.rel (%p15) target = $region8
    $region5: #{tpu_custom_call.1} parent=1 // loop_body
      %s19 = ssub.s32 %s14, 1
      %s20 = ssub.s32 %s14, 2
      %s27 = sadd.s32 1, %s22
      %p28 = scmp.ge.s32.totalorder %s27, 2
      %s29 = scalar_select %p28, 0, %s27
      %s30 = sadd.s32 1, %s21
      %s31 = scalar_select %p28, %s30, %s21
      %p32 = scmp.ge.s32.totalorder %s31, 2
      %s33 = scalar_select %p32, 0, %s31
      %s34 = ssub.s32 %s21, %s33
      %p35 = scmp.eq.s32.totalorder %s34, 0
      %s37 = sadd.s32 %s36, 1
      %s38 = scalar_select %p35, %s36, %s37
      %p41 = pneg %p35
      %p42 = scmp.eq.s32.totalorder %s14, 3
      %p43 = por %p41, %p42
      %p44 = scmp.ne.s32.totalorder %s36, %s39
      %p45 = scmp.eq.s32.totalorder %s14, 0
      %p46 = por %p44, %p45
      %p47 = scmp.ne.s32.totalorder %s36, %s39
      %p48 = scmp.eq.s32.totalorder %s19, 3
      %p49 = por %p47, %p48
      %p50 = scmp.ne.s32.totalorder %s39, %s40
      %p51 = scmp.eq.s32.totalorder %s19, 0
      %p52 = por %p50, %p51
      %p53 = scmp.ne.s32.totalorder %s39, %s40
      %p54 = scmp.eq.s32.totalorder %s20, 3
      %p55 = por %p53, %p54
      %p57 = scmp.ne.s32.totalorder %s40, %s56
      %p58 = scmp.eq.s32.totalorder %s20, 0
      %p59 = por %p57, %p58
      %s61 = sadd.s32 %s60, 1
      %p64 = scmp.eq.s32.totalorder %s14, 3
      %p65 = scmp.ne.s32.totalorder %s60, %s62
      %p66 = scmp.eq.s32.totalorder %s14, 0
      %p67 = por %p65, %p66
      %p68 = scmp.ne.s32.totalorder %s60, %s62
      %p69 = scmp.eq.s32.totalorder %s19, 3
      %p70 = por %p68, %p69
      %p71 = scmp.ne.s32.totalorder %s62, %s63
      %p72 = scmp.eq.s32.totalorder %s19, 0
      %p73 = por %p71, %p72
      %p74 = scmp.ne.s32.totalorder %s62, %s63
      %p75 = scmp.eq.s32.totalorder %s20, 3
      %p76 = por %p74, %p75
      %p78 = scmp.ne.s32.totalorder %s63, %s77
      %p79 = scmp.eq.s32.totalorder %s20, 0
      %p80 = por %p78, %p79
      %s82 = sadd.s32 %s81, 1
      %p85 = scmp.eq.s32.totalorder %s14, 3
      %p86 = scmp.ne.s32.totalorder %s81, %s83
      %p87 = scmp.eq.s32.totalorder %s14, 0
      %p88 = por %p86, %p87
      %p89 = scmp.ne.s32.totalorder %s81, %s83
      %p90 = scmp.eq.s32.totalorder %s19, 3
      %p91 = por %p89, %p90
      %p92 = scmp.ne.s32.totalorder %s83, %s84
      %p93 = scmp.eq.s32.totalorder %s19, 0
      %p94 = por %p92, %p93
      %p95 = scmp.ne.s32.totalorder %s83, %s84
      %p96 = scmp.eq.s32.totalorder %s20, 3
      %p97 = por %p95, %p96
      %p99 = scmp.ne.s32.totalorder %s84, %s98
      %p100 = scmp.eq.s32.totalorder %s20, 0
      %p101 = por %p99, %p100
      %s103 = sadd.s32 %s102, 1
      %p106 = scmp.eq.s32.totalorder %s14, 3
      %p107 = scmp.ne.s32.totalorder %s102, %s104
      %p108 = scmp.eq.s32.totalorder %s14, 0
      %p109 = por %p107, %p108
      %p110 = scmp.ne.s32.totalorder %s102, %s104
      %p111 = scmp.eq.s32.totalorder %s19, 3
      %p112 = por %p110, %p111
      %p113 = scmp.ne.s32.totalorder %s104, %s105
      %p114 = scmp.eq.s32.totalorder %s19, 0
      %p115 = por %p113, %p114
      %p116 = scmp.ne.s32.totalorder %s104, %s105
      %p117 = scmp.eq.s32.totalorder %s20, 3
      %p118 = por %p116, %p117
      %p120 = scmp.ne.s32.totalorder %s105, %s119
      %p121 = scmp.eq.s32.totalorder %s20, 0
      %p122 = por %p120, %p121
      %s123 = ssub.s32 %s22, %s29
      %p124 = scmp.eq.s32.totalorder %s123, 0
      %s126 = sadd.s32 %s125, 1
      %s127 = scalar_select %p124, %s125, %s126
      %p130 = pneg %p124
      %p131 = scmp.eq.s32.totalorder %s14, 3
      %p132 = por %p130, %p131
      %p133 = scmp.ne.s32.totalorder %s125, %s128
      %p134 = scmp.eq.s32.totalorder %s14, 0
      %p135 = por %p133, %p134
      %p136 = scmp.ne.s32.totalorder %s125, %s128
      %p137 = scmp.eq.s32.totalorder %s19, 3
      %p138 = por %p136, %p137
      %p139 = scmp.ne.s32.totalorder %s128, %s129
      %p140 = scmp.eq.s32.totalorder %s19, 0
      %p141 = por %p139, %p140
      %p142 = scmp.ne.s32.totalorder %s128, %s129
      %p143 = scmp.eq.s32.totalorder %s20, 3
      %p144 = por %p142, %p143
      %p146 = scmp.ne.s32.totalorder %s129, %s145
      %p147 = scmp.eq.s32.totalorder %s20, 0
      %p148 = por %p146, %p147
      %s149 = ssub.s32 %s21, %s33
      %s150 = ssub.s32 %s22, %s29
      %s151 = sor.u32 %s149, %s150
      %p152 = scmp.eq.s32.totalorder %s151, 0
      %s154 = sadd.s32 %s153, 1
      %s155 = scalar_select %p152, %s153, %s154
      %p158 = pneg %p152
      %p159 = scmp.eq.s32.totalorder %s14, 3
      %p160 = por %p158, %p159
      %p161 = scmp.ne.s32.totalorder %s153, %s156
      %p162 = scmp.eq.s32.totalorder %s14, 0
      %p163 = por %p161, %p162
      %p164 = scmp.ne.s32.totalorder %s153, %s156
      %p165 = scmp.eq.s32.totalorder %s19, 3
      %p166 = por %p164, %p165
      %p167 = scmp.ne.s32.totalorder %s156, %s157
      %p168 = scmp.eq.s32.totalorder %s19, 0
      %p169 = por %p167, %p168
      %p170 = scmp.ne.s32.totalorder %s156, %s157
      %p171 = scmp.eq.s32.totalorder %s20, 3
      %p172 = por %p170, %p171
      %p174 = scmp.ne.s32.totalorder %s157, %s173
      %p175 = scmp.eq.s32.totalorder %s20, 0
      %p176 = por %p174, %p175
      %p177 = scmp.le.s32.totalorder 1, %s14
      %p178 = scmp.lt.s32.totalorder %s14, 5
      %p179 = pnand %p177, %p178
      %p180 = pneg %p179
      // Predicated region
      $region9: #{tpu_custom_call.1} parent=5 // pred_check
        _
      $region10: #{tpu_custom_call.1} parent=5 // pred_check_branch
        %182 = sbr.rel (%p179) target = $region12
      $region11: #{tpu_custom_call.1} parent=5 // pred_region
        %s183 = ssub.s32 %s14, 1
        // Predicated region
        $region13: #{tpu_custom_call.1} parent=11 // pred_check
          %p184 = pneg %p73
        $region14: #{tpu_custom_call.1} parent=11 // pred_check_branch
          %186 = sbr.rel (%p184) target = $region16
        $region15: #{tpu_custom_call.1} parent=11 // pred_region
          _
        $region16: #{tpu_custom_call.1} parent=11 // pred_fallthru
          _
        // Predicated region
        $region17: #{tpu_custom_call.1} parent=11 // pred_check
          %p187 = pneg %p94
        $region18: #{tpu_custom_call.1} parent=11 // pred_check_branch
          %189 = sbr.rel (%p187) target = $region20
        $region19: #{tpu_custom_call.1} parent=11 // pred_region
          _
        $region20: #{tpu_custom_call.1} parent=11 // pred_fallthru
          _
        // Predicated region
        $region21: #{tpu_custom_call.1} parent=11 // pred_check
          %p190 = pneg %p115
        $region22: #{tpu_custom_call.1} parent=11 // pred_check_branch
          %192 = sbr.rel (%p190) target = $region24
        $region23: #{tpu_custom_call.1} parent=11 // pred_region
          _
        $region24: #{tpu_custom_call.1} parent=11 // pred_fallthru
          _
      $region12: #{tpu_custom_call.1} parent=5 // pred_fallthru
        _
      %p193 = scmp.lt.s32.totalorder %s14, 4
      // Predicated region
      $region25: #{tpu_custom_call.1} parent=5 // pred_check
        %p194 = pneg %p193
      $region26: #{tpu_custom_call.1} parent=5 // pred_check_branch
        %196 = sbr.rel (%p194) target = $region28
      $region27: #{tpu_custom_call.1} parent=5 // pred_region
        // Predicated region
        $region29: #{tpu_custom_call.1} parent=27 // pred_check
          %p197 = pneg %p46
        $region30: #{tpu_custom_call.1} parent=27 // pred_check_branch
          %199 = sbr.rel (%p197) target = $region32
        $region31: #{tpu_custom_call.1} parent=27 // pred_region
          %p200 = scmp.lt.s32.totalorder %s21, 1
          %s201 = scalar_select %p200, %s21, 1
          %s202 = smul.addr %s201, 2
          %s203 = smul.addr %s202, 4
          %s204 = scalar_lea.vmem %s0, %s203
        $region32: #{tpu_custom_call.1} parent=27 // pred_fallthru
          _
        // Predicated region
        $region33: #{tpu_custom_call.1} parent=27 // pred_check
          %p205 = pneg %p135
        $region34: #{tpu_custom_call.1} parent=27 // pred_check_branch
          %207 = sbr.rel (%p205) target = $region36
        $region35: #{tpu_custom_call.1} parent=27 // pred_region
          %s208 = sand.u32 %s125, 1
          %s209 = sand.u32 %s125, 1
          %s210 = smul.addr %s209, 16
          %s211 = scalar_lea.vmem [#allocation3], %s210
          %s212 = smul.addr %s22, 8
          %s213 = scalar_lea.vmem %s4, %s212
          // Predicated region
          $region37: #{tpu_custom_call.1} parent=35 // pred_check
            _
          $region38: #{tpu_custom_call.1} parent=35 // pred_check_branch
            %215 = sbr.rel (0) target = $region40
          $region39: #{tpu_custom_call.1} parent=35 // pred_region
            // Predicated region
            $region41: #{tpu_custom_call.1} parent=39 // pred_check
              _
            $region42: #{tpu_custom_call.1} parent=39 // pred_check_branch
              %217 = sbr.rel (0) target = $region44
            $region43: #{tpu_custom_call.1} parent=39 // pred_region
              // Predicated region
              $region56: #{tpu_custom_call.1} parent=43 // pred_check
                _
              $region57: #{tpu_custom_call.1} parent=43 // pred_check_branch
                %234 = sbr.rel (0) target = $region59
              $region58: #{tpu_custom_call.1} parent=43 // pred_region
                loop: start=0, step=1, limit=1
                $region60: #{tpu_custom_call.1} parent=58 // loop_pre_header
                  _
                $region61: #{tpu_custom_call.1} parent=58 // loop_header
                  %s236 = sphi 0, %s240
                  %p237 = scmp.ge.s32.totalorder %s236, 1
                  %s241 = sphi %s213, %s213
                  %s242 = sphi %s211, %s211
                $region62: #{tpu_custom_call.1} parent=58 // loop_header_branch
                  %239 = sbr.rel (%p237) target = $region66
                $region63: #{tpu_custom_call.1} parent=58 // loop_body
                  %v243 = vld [vmem:[%s241] sm:$0xff]
                  %244 = vst [vmem:[%s242] sm:$0xff] %v243
                  %v245 = vld [vmem:[%s241 + $0x10] sm:$0xff]
                  %246 = vst [vmem:[%s242 + $0x8] sm:$0xff] %v245
                $region64: #{tpu_custom_call.1} parent=58 // loop_footer
                  %s240 = sadd.s32 1, %s236
                $region65: #{tpu_custom_call.1} parent=58 // loop_footer_branch
                  %235 = sbr.rel target = $region61
                $region66: #{tpu_custom_call.1} parent=58 // loop_exit
                  _
              $region59: #{tpu_custom_call.1} parent=43 // pred_fallthru
                _
              // Predicated region
              $region67: #{tpu_custom_call.1} parent=43 // pred_check
                _
              $region68: #{tpu_custom_call.1} parent=43 // pred_check_branch
                %248 = sbr.rel target = $region70
              $region69: #{tpu_custom_call.1} parent=43 // pred_region
                _
              $region70: #{tpu_custom_call.1} parent=43 // pred_fallthru
                _
            $region44: #{tpu_custom_call.1} parent=39 // pred_fallthru
              _
            // Predicated region
            $region45: #{tpu_custom_call.1} parent=39 // pred_check
              _
            $region46: #{tpu_custom_call.1} parent=39 // pred_check_branch
              %219 = sbr.rel target = $region48
            $region47: #{tpu_custom_call.1} parent=39 // pred_region
              loop: start=0, step=1, limit=1
              $region49: #{tpu_custom_call.1} parent=47 // loop_pre_header
                _
              $region50: #{tpu_custom_call.1} parent=47 // loop_header
                %s222 = sphi 0, %s226
                %p223 = scmp.ge.s32.totalorder %s222, 1
                %s227 = sphi %s213, %s213
                %s228 = sphi %s211, %s211
              $region51: #{tpu_custom_call.1} parent=47 // loop_header_branch
                %225 = sbr.rel (%p223) target = $region55
              $region52: #{tpu_custom_call.1} parent=47 // loop_body
                %v229 = vld [vmem:[%s227] sm:$0xff]
                %230 = vst [vmem:[%s228] sm:$0xff] %v229
                %v231 = vld [vmem:[%s227 + $0x10] sm:$0xff]
                %232 = vst [vmem:[%s228 + $0x8] sm:$0xff] %v231
              $region53: #{tpu_custom_call.1} parent=47 // loop_footer
                %s226 = sadd.s32 1, %s222
              $region54: #{tpu_custom_call.1} parent=47 // loop_footer_branch
                %221 = sbr.rel target = $region50
              $region55: #{tpu_custom_call.1} parent=47 // loop_exit
                _
            $region48: #{tpu_custom_call.1} parent=39 // pred_fallthru
              _
          $region40: #{tpu_custom_call.1} parent=35 // pred_fallthru
            _
          %249 = vnop
        $region36: #{tpu_custom_call.1} parent=27 // pred_fallthru
          _
      $region28: #{tpu_custom_call.1} parent=5 // pred_fallthru
        _
      %p250 = scmp.le.s32.totalorder 1, %s14
      %p251 = scmp.lt.s32.totalorder %s14, 5
      %p252 = pnand %p250, %p251
      %p253 = pneg %p252
      // Predicated region
      $region71: #{tpu_custom_call.1} parent=5 // pred_check
        _
      $region72: #{tpu_custom_call.1} parent=5 // pred_check_branch
        %255 = sbr.rel (%p252) target = $region74
      $region73: #{tpu_custom_call.1} parent=5 // pred_region
        %s256 = ssub.s32 %s14, 1
        %s257 = sand.u32 %s128, 1
        %s258 = sand.u32 %s128, 1
        %s259 = smul.addr %s258, 16
        %s260 = scalar_lea.vmem [#allocation3], %s259
        // Predicated region
        $region75: #{tpu_custom_call.1} parent=73 // pred_check
          %p261 = pneg %p141
        $region76: #{tpu_custom_call.1} parent=73 // pred_check_branch
          %263 = sbr.rel (%p261) target = $region78
        $region77: #{tpu_custom_call.1} parent=73 // pred_region
          _
        $region78: #{tpu_custom_call.1} parent=73 // pred_fallthru
          _
        %p264 = scmp.lt.s32.totalorder %s23, 1
        %s265 = scalar_select %p264, %s23, 1
        %s266 = smul.addr %s265, 2
        %s267 = smul.addr %s266, 4
        %s268 = scalar_lea.vmem %s0, %s267
        %p269 = pneg %p52
        %p270 = pneg %p49
        %p271 = pneg %p73
        %p272 = pneg %p70
        %p273 = pneg %p94
        %p274 = pneg %p91
        %p275 = pneg %p115
        %p276 = pneg %p112
        %s277 = sand.u32 %s128, 1
        %s278 = sand.u32 %s128, 1
        %s279 = smul.addr %s278, 16
        %s280 = scalar_lea.vmem [#allocation3], %s279
        %p281 = pneg %p141
        %p282 = pneg %p138
        %p283 = pneg %p169
        %p284 = pneg %p166
        %s285 = sand.u32 %s156, 1
        %s286 = scalar_lea.sflag [#allocation5], %s285
        %s287 = sand.u32 %s156, 1
        %s288 = smul.addr %s287, 4
        %s289 = scalar_lea.vmem [#allocation4], %s288
        %p290 = scmp.lt.s32.totalorder %s23, 1
        %s291 = scalar_select %p290, %s23, 1
        %s292 = smul.addr %s291, 2
        %s293 = smul.addr %s292, 4
        %s294 = scalar_lea.vmem %s0, %s293
        %p296 = scmp.eq.s32.totalorder %s24, 0
        // Predicated region
        $region79: #{tpu_custom_call.1} parent=73 // pred_check
          %p297 = pneg %p296
        $region80: #{tpu_custom_call.1} parent=73 // pred_check_branch
          %299 = sbr.rel (%p297) target = $region82
        $region81: #{tpu_custom_call.1} parent=73 // pred_region
          %v300 = vld [vmem:[%s1] sm:$0xf]
          %v301 = vld [vmem:[%s1 + $0x4] sm:$0xf]
          %v302 = vld [vmem:[%s1 + $0x8] sm:$0xf]
          %v303 = vld [vmem:[%s1 + $0xc] sm:$0xf]
          %v304 = vld [vmem:[%s1 + $0x10] sm:$0xf]
          %v305 = vld [vmem:[%s1 + $0x14] sm:$0xf]
          %v306 = vld [vmem:[%s1 + $0x18] sm:$0xf]
          %v307 = vld [vmem:[%s1 + $0x1c] sm:$0xf]
          %v308 = vld [vmem:[%s1 + $0x20] sm:$0xf]
          %v309 = vld [vmem:[%s1 + $0x24] sm:$0xf]
          %v310 = vld [vmem:[%s1 + $0x28] sm:$0xf]
          %v311 = vld [vmem:[%s1 + $0x2c] sm:$0xf]
          %v312 = vld [vmem:[%s1 + $0x30] sm:$0xf]
          %v313 = vld [vmem:[%s1 + $0x34] sm:$0xf]
          %v314 = vld [vmem:[%s1 + $0x38] sm:$0xf]
          %v315 = vld [vmem:[%s1 + $0x3c] sm:$0xf]
          %v316 = vld [vmem:[%s1 + $0x40] sm:$0xf]
          %v317 = vld [vmem:[%s1 + $0x44] sm:$0xf]
          %v318 = vld [vmem:[%s1 + $0x48] sm:$0xf]
          %v319 = vld [vmem:[%s1 + $0x4c] sm:$0xf]
          %v320 = vld [vmem:[%s1 + $0x50] sm:$0xf]
          %v321 = vld [vmem:[%s1 + $0x54] sm:$0xf]
          %v322 = vld [vmem:[%s1 + $0x58] sm:$0xf]
          %v323 = vld [vmem:[%s1 + $0x5c] sm:$0xf]
          %v324 = vld [vmem:[%s1 + $0x60] sm:$0xf]
          %v325 = vld [vmem:[%s1 + $0x64] sm:$0xf]
          %v326 = vld [vmem:[%s1 + $0x68] sm:$0xf]
          %v327 = vld [vmem:[%s1 + $0x6c] sm:$0xf]
          %v328 = vld [vmem:[%s1 + $0x70] sm:$0xf]
          %v329 = vld [vmem:[%s1 + $0x74] sm:$0xf]
          %v330 = vld [vmem:[%s1 + $0x78] sm:$0xf]
          %v331 = vld [vmem:[%s1 + $0x7c] sm:$0xf]
          %v332 = vld [vmem:[%s294] sm:$0xff]
          %v334 = vcombine.high %v332, %v332
          %v336 = vpack.c.bf16 %v332, %v332
          %v337 = vpack.c.bf16 %v334, %v334
          %v370 = vunpack.c.l.b16 %v300
          %v371 = vunpack.c.l.b16 %v301
          %v372 = vunpack.c.l.b16 %v302
          %v373 = vunpack.c.l.b16 %v303
          %v374 = vunpack.c.l.b16 %v304
          %v375 = vunpack.c.l.b16 %v305
          %v376 = vunpack.c.l.b16 %v306
          %v377 = vunpack.c.l.b16 %v307
          %v378 = vunpack.c.l.b16 %v308
          %v379 = vunpack.c.l.b16 %v309
          %v380 = vunpack.c.l.b16 %v310
          %v381 = vunpack.c.l.b16 %v311
          %v382 = vunpack.c.l.b16 %v312
          %v383 = vunpack.c.l.b16 %v313
          %v384 = vunpack.c.l.b16 %v314
          %v385 = vunpack.c.l.b16 %v315
          %v386 = vunpack.c.l.b16 %v316
          %v387 = vunpack.c.l.b16 %v317
          %v388 = vunpack.c.l.b16 %v318
          %v389 = vunpack.c.l.b16 %v319
          %v390 = vunpack.c.l.b16 %v320
          %v391 = vunpack.c.l.b16 %v321
          %v392 = vunpack.c.l.b16 %v322
          %v393 = vunpack.c.l.b16 %v323
          %v394 = vunpack.c.l.b16 %v324
          %v395 = vunpack.c.l.b16 %v325
          %v396 = vunpack.c.l.b16 %v326
          %v397 = vunpack.c.l.b16 %v327
          %v398 = vunpack.c.l.b16 %v328
          %v399 = vunpack.c.l.b16 %v329
          %v400 = vunpack.c.l.b16 %v330
          %v401 = vunpack.c.l.b16 %v331
          %v402 = vpack.c.b16 %v371, %v370
          %v403 = vpack.c.b16 %v373, %v372
          %v404 = vpack.c.b16 %v375, %v374
          %v405 = vpack.c.b16 %v377, %v376
          %v406 = vpack.c.b16 %v379, %v378
          %v407 = vpack.c.b16 %v381, %v380
          %v408 = vpack.c.b16 %v383, %v382
          %v409 = vpack.c.b16 %v385, %v384
          %v410 = vpack.c.b16 %v387, %v386
          %v411 = vpack.c.b16 %v389, %v388
          %v412 = vpack.c.b16 %v391, %v390
          %v413 = vpack.c.b16 %v393, %v392
          %v414 = vpack.c.b16 %v395, %v394
          %v415 = vpack.c.b16 %v397, %v396
          %v416 = vpack.c.b16 %v399, %v398
          %v417 = vpack.c.b16 %v401, %v400
          %434 = vmatprep.subr.bf16.mxu0 0
          %435 = vmatpush1.bf16.msra.mxu0 %v402
          %436 = vmatprep.subr.bf16.mxu0 0
          %437 = vmatpush1.bf16.msra.mxu0 %v403
          %438 = vmatprep.subr.bf16.mxu0 0
          %439 = vmatpush1.bf16.msra.mxu0 %v404
          %440 = vmatprep.subr.bf16.mxu0 0
          %441 = vmatpush1.bf16.msra.mxu0 %v405
          %442 = vmatprep.subr.bf16.mxu0 0
          %443 = vmatpush1.bf16.msra.mxu0 %v406
          %444 = vmatprep.subr.bf16.mxu0 0
          %445 = vmatpush1.bf16.msra.mxu0 %v407
          %446 = vmatprep.subr.bf16.mxu0 0
          %447 = vmatpush1.bf16.msra.mxu0 %v408
          %448 = vmatprep.subr.bf16.mxu0 0
          %449 = vmatpush1.bf16.msra.mxu0 %v409
          %450 = vmatprep.subr.bf16.mxu0 0
          %451 = vmatpush1.bf16.msra.mxu0 %v410
          %452 = vmatprep.subr.bf16.mxu0 0
          %453 = vmatpush1.bf16.msra.mxu0 %v411
          %454 = vmatprep.subr.bf16.mxu0 0
          %455 = vmatpush1.bf16.msra.mxu0 %v412
          %456 = vmatprep.subr.bf16.mxu0 0
          %457 = vmatpush1.bf16.msra.mxu0 %v413
          %458 = vmatprep.subr.bf16.mxu0 0
          %459 = vmatpush1.bf16.msra.mxu0 %v414
          %460 = vmatprep.subr.bf16.mxu0 0
          %461 = vmatpush1.bf16.msra.mxu0 %v415
          %462 = vmatprep.subr.bf16.mxu0 0
          %463 = vmatpush1.bf16.msra.mxu0 %v416
          %464 = vmatprep.subr.bf16.mxu0 0
          %465 = vmatpush1.bf16.msra.mxu0 %v417
          %466 = vmatprep.mubr.bf16.mxu0 %v337
          %467 = vmatmul.mubr.bf16.gmra.mrb[0].mxu0 %v336
          %v468 = vpop.f32.mrb[0].mxu0
          %v469 = vadd.f32 0.0, %v468
          %v470 = vpop.f32.mrb[0].mxu0
          %v471 = vpop.f32.mrb[0].mxu0
          %v472 = vpop.f32.mrb[0].mxu0
          %473 = vdwg.mxu0
          %v474 = vld [vmem:[%s2] sm:$0xf]
          %v475 = vpack.c.bf16 %v469, %v469
          %v476 = vld [vmem:[%s3] sm:$0xff]
          %478 = vset.pattern.permute.xlu0 0
          %479 = vperm.xlu0 %478, %v476
          %v480 = vpop.permute.xlu0 %479
          %vm482 = vcmask 31744
          %v484 = vsel %vm482, %v474, 0
          %vm486 = vcmask 1041408
          %v488 = vsel %vm486, %v475, 0
          %490 = vmatprep.subr.bf16.mxu0 0
          %491 = vmatpush1.bf16.msra.mxu0 %v488
          %492 = vmatprep.subr.bf16.mxu0 0
          %493 = vmatpush1.bf16.msra.mxu0 0
          %494 = vmatprep.subr.bf16.mxu0 0
          %495 = vmatpush1.bf16.msra.mxu0 0
          %496 = vmatprep.subr.bf16.mxu0 0
          %497 = vmatpush1.bf16.msra.mxu0 0
          %498 = vmatprep.subr.bf16.mxu0 0
          %499 = vmatpush1.bf16.msra.mxu0 0
          %500 = vmatprep.subr.bf16.mxu0 0
          %501 = vmatpush1.bf16.msra.mxu0 0
          %502 = vmatprep.subr.bf16.mxu0 0
          %503 = vmatpush1.bf16.msra.mxu0 0
          %504 = vmatprep.subr.bf16.mxu0 0
          %505 = vmatpush1.bf16.msra.mxu0 0
          %506 = vmatprep.subr.bf16.mxu0 0
          %507 = vmatpush1.bf16.msra.mxu0 0
          %508 = vmatprep.subr.bf16.mxu0 0
          %509 = vmatpush1.bf16.msra.mxu0 0
          %510 = vmatprep.subr.bf16.mxu0 0
          %511 = vmatpush1.bf16.msra.mxu0 0
          %512 = vmatprep.subr.bf16.mxu0 0
          %513 = vmatpush1.bf16.msra.mxu0 0
          %514 = vmatprep.subr.bf16.mxu0 0
          %515 = vmatpush1.bf16.msra.mxu0 0
          %516 = vmatprep.subr.bf16.mxu0 0
          %517 = vmatpush1.bf16.msra.mxu0 0
          %518 = vmatprep.subr.bf16.mxu0 0
          %519 = vmatpush1.bf16.msra.mxu0 0
          %520 = vmatprep.subr.bf16.mxu0 0
          %521 = vmatpush1.bf16.msra.mxu0 0
          %522 = vmatprep.mubr.bf16.mxu0 0
          %523 = vmatmul.mubr.bf16.gmra.mrb[0].mxu0 %v484
          %v524 = vpop.f32.mrb[0].mxu0
          %v525 = vadd.f32 %v480, %v524
          %v526 = vpop.f32.mrb[0].mxu0
          %v527 = vpop.f32.mrb[0].mxu0
          %v528 = vpop.f32.mrb[0].mxu0
          %529 = vdwg.mxu0
          %v530 = vmax.f32 %v525, 0.0
          %vm531 = vcmask 130048
          %532 = vst.msk [vmem:[#allocation2] sm:$0xff] %vm531, %v530
        $region82: #{tpu_custom_call.1} parent=73 // pred_fallthru
          _
        %v533 = vld [vmem:[#allocation2] sm:$0xff]
        %v534 = vld [vmem:[%s260] sm:$0xff]
        %v535 = vld [vmem:[%s260 + $0x8] sm:$0xff]
        %vm536 = vcmask 130048
        %v538 = vsel %vm536, %v533, 0
        %540 = vmatprep.subr.mxu0 0.0
        %541 = vmatpush1.msra.mxu0 %v534
        %542 = vmatprep.subr.mxu0 0.0
        %543 = vmatpush1.msra.mxu0 %v535
        %544 = vmatprep.subr.mxu0 0.0
        %545 = vmatpush1.msra.mxu0 0.0
        %546 = vmatprep.subr.mxu0 0.0
        %547 = vmatpush1.msra.mxu0 0.0
        %548 = vmatprep.subr.mxu0 0.0
        %549 = vmatpush1.msra.mxu0 0.0
        %550 = vmatprep.subr.mxu0 0.0
        %551 = vmatpush1.msra.mxu0 0.0
        %552 = vmatprep.subr.mxu0 0.0
        %553 = vmatpush1.msra.mxu0 0.0
        %554 = vmatprep.subr.mxu0 0.0
        %555 = vmatpush1.msra.mxu0 0.0
        %556 = vmatprep.subr.mxu0 0.0
        %557 = vmatpush1.msra.mxu0 0.0
        %558 = vmatprep.subr.mxu0 0.0
        %559 = vmatpush1.msra.mxu0 0.0
        %560 = vmatprep.subr.mxu0 0.0
        %561 = vmatpush1.msra.mxu0 0.0
        %562 = vmatprep.subr.mxu0 0.0
        %563 = vmatpush1.msra.mxu0 0.0
        %564 = vmatprep.subr.mxu0 0.0
        %565 = vmatpush1.msra.mxu0 0.0
        %566 = vmatprep.subr.mxu0 0.0
        %567 = vmatpush1.msra.mxu0 0.0
        %568 = vmatprep.subr.mxu0 0.0
        %569 = vmatpush1.msra.mxu0 0.0
        %570 = vmatprep.subr.mxu0 0.0
        %571 = vmatpush1.msra.mxu0 0.0
        %572 = vmatprep.subr.mxu0 0.0
        %573 = vmatpush1.msra.mxu0 0.0
        %574 = vmatprep.subr.mxu0 0.0
        %575 = vmatpush1.msra.mxu0 0.0
        %576 = vmatprep.subr.mxu0 0.0
        %577 = vmatpush1.msra.mxu0 0.0
        %578 = vmatprep.subr.mxu0 0.0
        %579 = vmatpush1.msra.mxu0 0.0
        %580 = vmatprep.subr.mxu0 0.0
        %581 = vmatpush1.msra.mxu0 0.0
        %582 = vmatprep.subr.mxu0 0.0
        %583 = vmatpush1.msra.mxu0 0.0
        %584 = vmatprep.subr.mxu0 0.0
        %585 = vmatpush1.msra.mxu0 0.0
        %586 = vmatprep.subr.mxu0 0.0
        %587 = vmatpush1.msra.mxu0 0.0
        %588 = vmatprep.subr.mxu0 0.0
        %589 = vmatpush1.msra.mxu0 0.0
        %590 = vmatprep.subr.mxu0 0.0
        %591 = vmatpush1.msra.mxu0 0.0
        %592 = vmatprep.subr.mxu0 0.0
        %593 = vmatpush1.msra.mxu0 0.0
        %594 = vmatprep.subr.mxu0 0.0
        %595 = vmatpush1.msra.mxu0 0.0
        %596 = vmatprep.subr.mxu0 0.0
        %597 = vmatpush1.msra.mxu0 0.0
        %598 = vmatprep.subr.mxu0 0.0
        %599 = vmatpush1.msra.mxu0 0.0
        %600 = vmatprep.subr.mxu0 0.0
        %601 = vmatpush1.msra.mxu0 0.0
        %602 = vmatprep.subr.mxu0 0.0
        %603 = vmatpush1.msra.mxu0 0.0
        %604 = vmatprep.mubr.f32.mxu0 0.0
        %605 = vmatmul.mubr.f32.gmra.mrb[0].mxu0 %v538
        %v606 = vpop.f32.mrb[0].mxu0
        %v607 = vadd.f32 0.0, %v606
        %v608 = vpop.f32.mrb[0].mxu0
        %609 = vdwg.mxu0
        %v610 = vpack.c.bf16 %v607, %v607
        %611 = vst [vmem:[%s289] sm:$0xf] %v610
        %s612 = sand.u32 %s156, 1
        %s613 = scalar_lea.sflag [#allocation5], %s612
        %s614 = sand.u32 %s156, 1
        %s615 = smul.addr %s614, 4
        %s616 = scalar_lea.vmem [#allocation4], %s615
        // Predicated region
        $region83: #{tpu_custom_call.1} parent=73 // pred_check
          %p617 = pneg %p166
        $region84: #{tpu_custom_call.1} parent=73 // pred_check_branch
          %619 = sbr.rel (%p617) target = $region86
        $region85: #{tpu_custom_call.1} parent=73 // pred_region
          %s621 = ssub.s32 64, 64
          %622 = vsyncadd %s613, %s621
          %s623 = smul.addr %s23, 2
          %s624 = sadd.s32 %s24, %s623
          %s625 = smul.addr %s624, 64
          %s626 = scalar_lea.hbm %s5, %s625
          %s628 = sshll.u32 %s616, 4
          %s629 = int_to_ptr.vmem [resolvable:$true] %s628
          %631 = dma.vmem_to_hbm [thread:$0]  %s629, 64, %s626, %s613
        $region86: #{tpu_custom_call.1} parent=73 // pred_fallthru
          _
      $region74: #{tpu_custom_call.1} parent=5 // pred_fallthru
        _
      %p632 = scmp.le.s32.totalorder 2, %s14
      // Predicated region
      $region87: #{tpu_custom_call.1} parent=5 // pred_check
        %p633 = pneg %p632
      $region88: #{tpu_custom_call.1} parent=5 // pred_check_branch
        %635 = sbr.rel (%p633) target = $region90
      $region89: #{tpu_custom_call.1} parent=5 // pred_region
        %s636 = ssub.s32 %s14, 2
        // Predicated region
        $region91: #{tpu_custom_call.1} parent=89 // pred_check
          %p637 = pneg %p172
        $region92: #{tpu_custom_call.1} parent=89 // pred_check_branch
          %639 = sbr.rel (%p637) target = $region94
        $region93: #{tpu_custom_call.1} parent=89 // pred_region
          %s640 = sand.u32 %s157, 1
          %s641 = scalar_lea.sflag [#allocation5], %s640
          %s642 = sand.u32 %s157, 1
          %s643 = smul.addr %s642, 4
          %s644 = scalar_lea.vmem [#allocation4], %s643
          %645 = dma.done %s641, 64
        $region94: #{tpu_custom_call.1} parent=89 // pred_fallthru
          _
      $region90: #{tpu_custom_call.1} parent=5 // pred_fallthru
        _
    $region6: #{tpu_custom_call.1} parent=1 // loop_footer
      %s18 = sadd.s32 1, %s14
    $region7: #{tpu_custom_call.1} parent=1 // loop_footer_branch
      %13 = sbr.rel target = $region3
    $region8: #{tpu_custom_call.1} parent=1 // loop_exit
      _
    %646 = vsyncpa [#allocation5], 1
    %s647 = scalar_lea.sflag [#allocation5], 1
    %648 = vsyncpa %s647, 1

</llo_original>
